<compile_context>
chip_gen: v7x
topology: tpu7x:2x2x1
jax: 0.10.0
libtpu: 0.0.40
codegen_flags: <defaults>
</compile_context>

<pallas_src>
import functools

import jax
import jax.numpy as jnp
import numpy as np
from jax.experimental import pallas as pl
from jax.experimental.pallas import tpu as pltpu


def _round_up(a, b):
    return -(-a // b) * b


def _cdiv(a, b):
    return -(-a // b)


def _dw_conv_kernel(*refs, S, Kq, mult, TL, LB, CB, has_bias):
    """One (batch, time-tile) step of a stride-1 depthwise conv1d.

    refs (in order):
      x_cur_ref  : (1, S, C, TL)     current time tile, one row per stride phase
      x_halo_ref : (1, S, C, H)      right halo (H >= Kq-1, multiple of 128)
      w_ref      : (C, S*Kq*mult)    per-input-channel tap columns (f32)
      b_ref      : (C, mult)         bias (f32), only when has_bias
      o_ref      : (1, mult, C, TL)  output tile
      edge_ref   : (S, C, LB + H)    scratch: last LB lanes of tile + halo
    """
    if has_bias:
        x_cur_ref, x_halo_ref, w_ref, b_ref, o_ref, edge_ref = refs
    else:
        x_cur_ref, x_halo_ref, w_ref, o_ref, edge_ref = refs
        b_ref = None

    C = x_cur_ref.shape[2]
    n_lb = TL // LB

    # Stitch ONLY the tile/halo boundary: per-step VMEM store traffic is
    # O(LB + H) instead of O(TL + H); bulk taps read x_cur_ref directly.
    edge_ref[:, :, :LB] = x_cur_ref[0, :, :, TL - LB:]
    edge_ref[:, :, LB:] = x_halo_ref[0]

    for m in range(mult):                       # channel multiplier (usually 1)
        for c0 in range(0, C, CB):              # channel (sublane) blocks
            c1 = min(C, c0 + CB)
            cw = c1 - c0
            # Hoist the per-tap weight loads out of the lane-block loop:
            # one (cw, 1) f32 load per tap per tile.
            wk = []
            for r in range(S):
                for q in range(Kq):
                    col = (r * Kq + q) * mult + m
                    wk.append(w_ref[c0:c1, col:col + 1])
            for lb in range(n_lb):              # lane blocks (register sub-tiles)
                l0 = lb * LB
                last = lb == n_lb - 1
                # f32 accumulator for one (cw, LB) sub-tile, vreg-resident.
                # Initialise from the broadcast bias (saves zero-fill + add).
                if has_bias:
                    acc = jnp.broadcast_to(
                        b_ref[c0:c1, m:m + 1], (cw, LB)).astype(jnp.float32)
                else:
                    acc = None
                t = 0
                for r in range(S):              # stride phase (usually 1)
                    for q in range(Kq):         # taps, innermost (static unroll)
                        if last:
                            xk = edge_ref[r, c0:c1, q:q + LB]
                        else:
                            xk = x_cur_ref[0, r, c0:c1, l0 + q:l0 + q + LB]
                        # NOTE: astype is a no-op for f32 inputs; for bf16 a
                        # per-tap upcast remains (accumulation stays f32).
                        prod = xk.astype(jnp.float32) * wk[t]
                        acc = prod if acc is None else acc + prod
                        t += 1
                o_ref[0, m, c0:c1, l0:l0 + LB] = acc.astype(o_ref.dtype)


def depthwise_conv1d(x, weight, bias=None, *, stride=1, padding=0):
    """Depthwise Conv1d matching nn.Conv1d(..., groups=in_channels).

    x      : (N, C_in, L)    (PyTorch NCL layout)
    weight : (C_out, 1, K)
    bias   : (C_out,) or None
    returns: (N, C_out, L_out)
    """
    N, C_in, L = x.shape
    C_out, w_in, K = weight.shape
    assert w_in == 1 and C_out % C_in == 0, "depthwise conv expects groups == C_in"
    mult = C_out // C_in
    s = int(stride)
    L_pad = L + 2 * padding
    assert L_pad >= K, "sequence (plus padding) shorter than kernel"
    L_out = (L_pad - K) // s + 1
    assert L_out >= 1
    has_bias = bias is not None

    # ---- polyphase decomposition: the kernel only ever runs stride == 1 ------
    S = s
    Kq = _cdiv(K, s)
    NCOL = S * Kq * mult

    itemsize = jnp.dtype(x.dtype).itemsize
    H = _round_up(max(Kq - 1, 1), 128)          # halo width (lane multiple)
    CB = 8 * max(1, 4 // max(itemsize, 1))      # channel block: 8 f32 / 16 bf16

    def _lane_block(tl):
        # lane sub-tile: a multiple of H that divides tl, targeting ~512 lanes
        n_h = tl // H
        best = 1
        for d in range(1, n_h + 1):
            if n_h % d == 0 and d * H <= max(512, H):
                best = d
        return best * H

    def _vmem_est(tl):
        lb = _lane_block(tl)
        b = 2 * S * C_in * tl * itemsize            # cur tile (double-buffered)
        b += 2 * S * C_in * H * itemsize            # halo     (double-buffered)
        b += 2 * mult * C_in * tl * itemsize        # output   (double-buffered)
        b += S * C_in * (lb + H) * itemsize         # edge scratch
        b += 2 * _round_up(C_in, 8) * _round_up(NCOL, 128) * 4   # f32 weights
        b += 2 * _round_up(C_in, 8) * 128 * 4                    # bias
        b += 4 * CB * lb * 4                                     # live temps
        return b

    # ---- per-generation VMEM budget / clamp ----------------------------------
    try:
        info = pltpu.get_tpu_info()
        vmem_cap = int(getattr(info, "vmem_capacity_bytes", 64 * 1024 * 1024))
    except Exception:
        vmem_cap = 64 * 1024 * 1024
    if vmem_cap > 96 * 1024 * 1024:             # v5e / v6e: 128 MiB per core
        budget, vmem_clamp = 48 * 1024 * 1024, 96 * 1024 * 1024
    else:                                       # v7x-class: 64 MiB per core
        budget, vmem_clamp = 24 * 1024 * 1024, 48 * 1024 * 1024
    tl_cap = 2048

    # ---- time-tile size: multiple of H, budgeted against scoped VMEM ---------
    TL = max(H, min(_round_up(L_out, H), _round_up(tl_cap, H)))
    while TL > H and _vmem_est(TL) > budget:
        TL -= H
    n_tiles = _cdiv(L_out, TL)
    # v7x megacore: batch-1 inputs get >= 2 parallel grid steps when possible.
    if N == 1 and n_tiles == 1 and TL >= 2 * H:
        TL = max(H, _round_up(_cdiv(L_out, 2), H))
        n_tiles = _cdiv(L_out, TL)
    LB = _lane_block(TL)
    ratio = TL // H
    # stored per-phase length: every tile + its halo stays in-bounds
    L_store = max(n_tiles * TL + H, _cdiv(L + padding, s))

    # ---- glue (plain JAX): zero-pad time, split stride phases ----------------
    # TODO(synk): the zero-padding still builds a padded copy of x in HBM when
    # XLA cannot fuse it; allow_input_fusion below permits the fusion.
    pad_right = s * L_store - L - padding
    x_p = jnp.pad(x, ((0, 0), (0, 0), (padding, pad_right)))
    if s == 1:
        x_ph = x_p[:, None, :, :]                                    # (N, 1, C, L_store)
    else:
        x_ph = jnp.transpose(x_p.reshape(N, C_in, L_store, s), (0, 3, 1, 2))

    # weights -> per-input-channel f32 columns, PyTorch group order c_out=c*mult+m
    w2 = weight[:, 0, :].astype(jnp.float32)                         # (C_out, K)
    w2 = jnp.pad(w2, ((0, 0), (0, S * Kq - K)))                      # zero taps past K
    w5 = jnp.transpose(w2.reshape(C_in, mult, Kq, S), (0, 3, 2, 1))  # (C_in, S, Kq, mult)
    w_cols = w5.reshape(C_in, NCOL)
    if has_bias:
        b2 = bias.astype(jnp.float32).reshape(C_in, mult)

    kernel = functools.partial(_dw_conv_kernel, S=S, Kq=Kq, mult=mult,
                               TL=TL, LB=LB, CB=CB, has_bias=has_bias)
    vmem_limit = int(min(max(32 * 1024 * 1024, 2 * _vmem_est(TL)), vmem_clamp))
    cost = pl.CostEstimate(
        flops=int(2 * N * C_out * L_out * K),
        transcendentals=0,
        bytes_accessed=int(itemsize * (N * S * C_in * n_tiles * (TL + H)
                                       + N * mult * C_in * n_tiles * TL)
                           + 4 * (C_in * NCOL + C_out)),
    )

    in_specs = [
        pl.BlockSpec((1, S, C_in, TL), lambda n, j: (n, 0, 0, j)),
        pl.BlockSpec((1, S, C_in, H), lambda n, j: (n, 0, 0, (j + 1) * ratio)),
        pl.BlockSpec((C_in, NCOL), lambda n, j: (0, 0)),
    ]
    args = [x_ph, x_ph, w_cols]
    allow_fusion = [True, True, False]
    if has_bias:
        in_specs.append(pl.BlockSpec((C_in, mult), lambda n, j: (0, 0)))
        args.append(b2)
        allow_fusion.append(False)

    y4 = pl.pallas_call(
        kernel,
        out_shape=jax.ShapeDtypeStruct((N, mult, C_in, n_tiles * TL), x.dtype),
        grid_spec=pltpu.PrefetchScalarGridSpec(
            num_scalar_prefetch=0,
            grid=(N, n_tiles),
            in_specs=in_specs,
            out_specs=pl.BlockSpec((1, mult, C_in, TL), lambda n, j: (n, 0, 0, j)),
            scratch_shapes=[pltpu.VMEM((S, C_in, LB + H), x.dtype)],
        ),
        compiler_params=pltpu.CompilerParams(
            dimension_semantics=("parallel", "parallel"),
            vmem_limit_bytes=vmem_limit,
            allow_input_fusion=allow_fusion,
        ),
        cost_estimate=cost,
    )(*args)

    # (N, mult, C_in, n_tiles*TL) -> (N, C_out, L_out).
    y4 = y4[..., :L_out]
    if mult == 1:
        return y4[:, 0]
    return jnp.transpose(y4, (0, 2, 1, 3)).reshape(N, C_out, L_out)


def _reference_np(x, weight, bias, *, stride, padding):
    """Plain-numpy PyTorch grouped-conv semantics (groups == C_in)."""
    x = np.asarray(x, np.float32)
    w = np.asarray(weight, np.float32)
    N, C_in, L = x.shape
    C_out, _, K = w.shape
    mult = C_out // C_in
    xp = np.pad(x, ((0, 0), (0, 0), (padding, padding)))
    L_out = (L + 2 * padding - K) // stride + 1
    y = np.zeros((N, C_out, L_out), np.float32)
    for o in range(C_out):
        c = o // mult
        for t in range(L_out):
            y[:, o, t] = (xp[:, c, t * stride:t * stride + K] * w[o, 0]).sum(-1)
    if bias is not None:
        y = y + np.asarray(bias, np.float32)[None, :, None]
    return y


if __name__ == "__main__":
    key = jax.random.PRNGKey(0)

    # (N, C_in, C_out, L, K, stride, padding, use_bias, dtype, rtol, atol)
    configs = [
        (2, 4, 4, 16, 3, 1, 1, True, jnp.float32, 1e-5, 1e-5),     # primary config
        (2, 4, 4, 16, 3, 2, 1, True, jnp.float32, 1e-5, 1e-5),     # strided (polyphase)
        (2, 4, 8, 16, 3, 1, 1, False, jnp.float32, 1e-5, 1e-5),    # channel mult, no bias
        (2, 8, 8, 200, 7, 1, 3, True, jnp.float32, 1e-5, 1e-5),    # wider kernel
        (1, 8, 8, 2048, 3, 1, 1, True, jnp.float32, 1e-5, 1e-5),   # multi-tile + sub-tiles
        (1, 6, 6, 600, 5, 2, 2, True, jnp.float32, 1e-5, 1e-5),    # multi-tile, stride 2, ragged C
        (2, 8, 8, 300, 3, 1, 1, True, jnp.bfloat16, 2e-2, 2e-2),   # bf16 path
    ]
    for (N, C_in, C_out, L, K, stride, padding, use_bias, dt, rtol, atol) in configs:
        key, kx, kw, kb = jax.random.split(key, 4)
        x = jax.random.normal(kx, (N, C_in, L), dtype=jnp.float32).astype(dt)
        bound = 1.0 / np.sqrt(1 * K)             # PyTorch-style uniform init bound
        weight = jax.random.uniform(kw, (C_out, 1, K), jnp.float32, -bound, bound)
        bias = (jax.random.uniform(kb, (C_out,), jnp.float32, -bound, bound)
                if use_bias else None)

        y = depthwise_conv1d(x, weight, bias, stride=stride, padding=padding)
        y = jax.block_until_ready(y)

        y_ref = _reference_np(np.asarray(x.astype(jnp.float32)), np.asarray(weight),
                              None if bias is None else np.asarray(bias),
                              stride=stride, padding=padding)
        np.testing.assert_allclose(np.asarray(y.astype(jnp.float32)), y_ref,
                                   rtol=rtol, atol=atol)

    print("KERNEL_OK")
</pallas_src>

<mosaic_0001>
module attributes {stable_mosaic.version = 11 : i64} {
  func.func @_dw_conv_kernel(%arg0: i32, %arg1: i32, %arg2: memref<1x1x4x128xf32, #tpu.memory_space<vmem>>, %arg3: memref<1x1x4x128xf32, #tpu.memory_space<vmem>>, %arg4: memref<4x3xf32, #tpu.memory_space<vmem>>, %arg5: memref<4x1xf32, #tpu.memory_space<vmem>>, %arg6: memref<1x1x4x128xf32, #tpu.memory_space<vmem>>, %arg7: memref<1x4x256xf32, #tpu.memory_space<vmem>>) attributes {dimension_semantics = [#tpu.dimension_semantics<parallel>, #tpu.dimension_semantics<parallel>], iteration_bounds = array<i64: 2, 1>, scalar_prefetch = 0 : i64, scratch_operands = 1 : i64, tpu.core_type = #tpu.core_type<tc>, window_params = [{transform_indices = @transform_0, window_bounds = array<i64: 1, 1, 4, 128>}, {transform_indices = @transform_1, window_bounds = array<i64: 1, 1, 4, 128>}, {pipeline_mode = #tpu.pipeline_mode<synchronous>, transform_indices = @transform_2, window_bounds = array<i64: 4, 3>}, {pipeline_mode = #tpu.pipeline_mode<synchronous>, transform_indices = @transform_3, window_bounds = array<i64: 4, 1>}, {transform_indices = @transform_4, window_bounds = array<i64: 1, 1, 4, 128>}]} {
    %c0 = arith.constant 0 : index
    %c0_0 = arith.constant 0 : index
    %c0_1 = arith.constant 0 : index
    %c0_2 = arith.constant 0 : index
    %0 = vector.load %arg2[%c0, %c0_0, %c0_1, %c0_2] : memref<1x1x4x128xf32, #tpu.memory_space<vmem>>, vector<1x1x4x128xf32>
    %1 = vector.shape_cast %0 : vector<1x1x4x128xf32> to vector<1x4x128xf32>
    %c0_3 = arith.constant 0 : index
    %c0_4 = arith.constant 0 : index
    %c0_5 = arith.constant 0 : index
    %2 = vector.load %arg7[%c0_3, %c0_4, %c0_5] : memref<1x4x256xf32, #tpu.memory_space<vmem>>, vector<1x4x128xf32>
    tpu.vector_store %arg7[%c0_3, %c0_4, %c0_5], %1 {strides = array<i32>} : memref<1x4x256xf32, #tpu.memory_space<vmem>>, vector<1x4x128xf32>,
    %c0_6 = arith.constant 0 : index
    %c0_7 = arith.constant 0 : index
    %c0_8 = arith.constant 0 : index
    %c0_9 = arith.constant 0 : index
    %3 = vector.load %arg3[%c0_6, %c0_7, %c0_8, %c0_9] : memref<1x1x4x128xf32, #tpu.memory_space<vmem>>, vector<1x1x4x128xf32>
    %4 = vector.shape_cast %3 : vector<1x1x4x128xf32> to vector<1x4x128xf32>
    %c0_10 = arith.constant 0 : index
    %c0_11 = arith.constant 0 : index
    %c128 = arith.constant 128 : index
    %5 = vector.load %arg7[%c0_10, %c0_11, %c128] : memref<1x4x256xf32, #tpu.memory_space<vmem>>, vector<1x4x128xf32>
    tpu.vector_store %arg7[%c0_10, %c0_11, %c128], %4 {strides = array<i32>} : memref<1x4x256xf32, #tpu.memory_space<vmem>>, vector<1x4x128xf32>,
    %c0_12 = arith.constant 0 : index
    %c0_13 = arith.constant 0 : index
    %6 = vector.load %arg4[%c0_12, %c0_13] : memref<4x3xf32, #tpu.memory_space<vmem>>, vector<4x1xf32>
    %c0_14 = arith.constant 0 : index
    %c1 = arith.constant 1 : index
    %7 = vector.load %arg4[%c0_14, %c1] : memref<4x3xf32, #tpu.memory_space<vmem>>, vector<4x1xf32>
    %c0_15 = arith.constant 0 : index
    %c2 = arith.constant 2 : index
    %8 = vector.load %arg4[%c0_15, %c2] : memref<4x3xf32, #tpu.memory_space<vmem>>, vector<4x1xf32>
    %c0_16 = arith.constant 0 : index
    %c0_17 = arith.constant 0 : index
    %9 = vector.load %arg5[%c0_16, %c0_17] : memref<4x1xf32, #tpu.memory_space<vmem>>, vector<4x1xf32>
    %10 = vector.shape_cast %9 : vector<4x1xf32> to vector<4x1xf32>
    %11 = vector.broadcast %10 : vector<4x1xf32> to vector<4x128xf32>
    %c0_18 = arith.constant 0 : index
    %c0_19 = arith.constant 0 : index
    %c0_20 = arith.constant 0 : index
    %12 = vector.load %arg7[%c0_18, %c0_19, %c0_20] : memref<1x4x256xf32, #tpu.memory_space<vmem>>, vector<1x4x128xf32>
    %13 = vector.shape_cast %12 : vector<1x4x128xf32> to vector<4x128xf32>
    %14 = vector.broadcast %6 : vector<4x1xf32> to vector<4x128xf32>
    %15 = arith.mulf %13, %14 : vector<4x128xf32>
    %16 = arith.addf %11, %15 : vector<4x128xf32>
    %c0_21 = arith.constant 0 : index
    %c0_22 = arith.constant 0 : index
    %c1_23 = arith.constant 1 : index
    %17 = vector.load %arg7[%c0_21, %c0_22, %c1_23] : memref<1x4x256xf32, #tpu.memory_space<vmem>>, vector<1x4x128xf32>
    %18 = vector.shape_cast %17 : vector<1x4x128xf32> to vector<4x128xf32>
    %19 = vector.broadcast %7 : vector<4x1xf32> to vector<4x128xf32>
    %20 = arith.mulf %18, %19 : vector<4x128xf32>
    %21 = arith.addf %16, %20 : vector<4x128xf32>
    %c0_24 = arith.constant 0 : index
    %c0_25 = arith.constant 0 : index
    %c2_26 = arith.constant 2 : index
    %22 = vector.load %arg7[%c0_24, %c0_25, %c2_26] : memref<1x4x256xf32, #tpu.memory_space<vmem>>, vector<1x4x128xf32>
    %23 = vector.shape_cast %22 : vector<1x4x128xf32> to vector<4x128xf32>
    %24 = vector.broadcast %8 : vector<4x1xf32> to vector<4x128xf32>
    %25 = arith.mulf %23, %24 : vector<4x128xf32>
    %26 = arith.addf %21, %25 : vector<4x128xf32>
    %c0_27 = arith.constant 0 : index
    %c0_28 = arith.constant 0 : index
    %c0_29 = arith.constant 0 : index
    %c0_30 = arith.constant 0 : index
    %27 = vector.load %arg6[%c0_27, %c0_28, %c0_29, %c0_30] : memref<1x1x4x128xf32, #tpu.memory_space<vmem>>, vector<1x1x4x128xf32>
    %28 = vector.shape_cast %27 : vector<1x1x4x128xf32> to vector<4x128xf32>
    %29 = vector.shape_cast %26 : vector<4x128xf32> to vector<1x1x4x128xf32>
    tpu.vector_store %arg6[%c0_27, %c0_28, %c0_29, %c0_30], %29 {strides = array<i32>} : memref<1x1x4x128xf32, #tpu.memory_space<vmem>>, vector<1x1x4x128xf32>,
    return
  }
  func.func @transform_0(%arg0: i32, %arg1: i32) -> (i32, i32, i32, i32) {
    %c0_i32 = arith.constant 0 : i32
    %c0_i32_0 = arith.constant 0 : i32
    %c0_i32_1 = arith.constant 0 : i32
    return %arg0, %c0_i32, %c0_i32_0, %arg1 : i32, i32, i32, i32
  }
  func.func @transform_1(%arg0: i32, %arg1: i32) -> (i32, i32, i32, i32) {
    %c1_i32 = arith.constant 1 : i32
    %0 = arith.addi %arg1, %c1_i32 : i32
    %c1_i32_0 = arith.constant 1 : i32
    %1 = arith.muli %0, %c1_i32_0 : i32
    %c0_i32 = arith.constant 0 : i32
    %c0_i32_1 = arith.constant 0 : i32
    %c0_i32_2 = arith.constant 0 : i32
    return %arg0, %c0_i32, %c0_i32_1, %1 : i32, i32, i32, i32
  }
  func.func @transform_2(%arg0: i32, %arg1: i32) -> (i32, i32) {
    %c0_i32 = arith.constant 0 : i32
    %c0_i32_0 = arith.constant 0 : i32
    %c0_i32_1 = arith.constant 0 : i32
    return %c0_i32, %c0_i32_0 : i32, i32
  }
  func.func @transform_3(%arg0: i32, %arg1: i32) -> (i32, i32) {
    %c0_i32 = arith.constant 0 : i32
    %c0_i32_0 = arith.constant 0 : i32
    %c0_i32_1 = arith.constant 0 : i32
    return %c0_i32, %c0_i32_0 : i32, i32
  }
  func.func @transform_4(%arg0: i32, %arg1: i32) -> (i32, i32, i32, i32) {
    %c0_i32 = arith.constant 0 : i32
    %c0_i32_0 = arith.constant 0 : i32
    %c0_i32_1 = arith.constant 0 : i32
    return %arg0, %c0_i32, %c0_i32_0, %arg1 : i32, i32, i32, i32
  }
}

</mosaic_0001>

<llo_original>
// kernel: tpu_custom_call.1
$region0: #{tpu_custom_call.1}
  #allocation0 [shape = 'u32[]', space=smem, size = 0x4, offset = 0x4, fixed_abs, tag = 'smem constant byte address 0x4 - core index']
  #allocation1 [shape = 'u32[144,128]{1,0:T(1,128)}', space=vmem, size = 0x12000, scoped, tag = 'internal scratch']
  #allocation2 [shape = 'f32[1,4,256]{2,1,0:T(4,128)}', space=vmem, size = 0x1000, scoped, tag = 'scratch operand']
  %s0 = inlined_call_operand.hbm [shape: f32[2,1,4,256], index: 0, kind: input, shape index: {}]
  %s1 = inlined_call_operand.hbm [shape: f32[2,1,4,256], index: 1, kind: input, shape index: {}]
  %s2 = inlined_call_operand.vmem [shape: f32[4,3], index: 2, kind: input, shape index: {}]
  %s3 = inlined_call_operand.vmem [shape: f32[4,1], index: 3, kind: input, shape index: {}]
  %s4 = inlined_call_operand.hbm [shape: f32[2,1,4,128], index: 4, kind: output, shape index: {}]
  %s5 = sld [smem:[#allocation0]]
  $region57: #{tpu_custom_call.1} parent=0
    _
  %s7 = ssub.s32 1, %s5
  %s8 = scalar_select 0, %s7, %s5
  $region1: #{tpu_custom_call.1} parent=0
    #allocation3 [shape = 'u8[4096]{0}', space=vmem, size = 0x1000, scoped, tag = 'input window, operand 0']
    #allocation4 [shape = 's32[2]{0}', space=sflag, size = 0x8, scoped, tag = 'scoped memory for tpu_custom_call.1']
    #allocation5 [shape = 's32[2]{0}', space=sflag, size = 0x8, scoped, tag = 'scoped memory for tpu_custom_call.1']
    #allocation6 [shape = 'u8[4096]{0}', space=vmem, size = 0x1000, scoped, tag = 'input window, operand 1']
    #allocation7 [shape = 's32[2]{0}', space=sflag, size = 0x8, scoped, tag = 'scoped memory for tpu_custom_call.1']
    #allocation8 [shape = 'u8[4096]{0}', space=vmem, size = 0x1000, scoped, tag = 'output window, operand 0']
    %9 = vsyncpa [#allocation4], 0
    %s10 = scalar_lea.sflag [#allocation4], 1
    %11 = vsyncpa %s10, 0
    %12 = vsyncpa [#allocation7], 0
    %s13 = scalar_lea.sflag [#allocation7], 1
    %14 = vsyncpa %s13, 0
    %15 = vsyncpa [#allocation5], 0
    %s16 = scalar_lea.sflag [#allocation5], 1
    %17 = vsyncpa %s16, 0
    loop: start=0, step=1, limit=4
    $region2: #{tpu_custom_call.1} parent=1 // loop_pre_header
      _
    $region3: #{tpu_custom_call.1} parent=1 // loop_header
      %s19 = sphi 0, %s23
      %p20 = scmp.ge.s32.totalorder %s19, 4
      %s26 = sphi 0, %s38
      %s27 = sphi 0, %s34
      %s28 = sphi 0, %s26
      %s29 = sphi 0, %s27
      %s30 = sphi 0, %s28
      %s31 = sphi 0, %s29
      %s43 = sphi 0, %s45
      %s46 = sphi 0, %s43
      %s47 = sphi 0, %s46
      %s63 = sphi 0, %s47
      %s73 = sphi 0, %s75
      %s76 = sphi 0, %s73
      %s77 = sphi 0, %s76
      %s93 = sphi 0, %s77
      %s97 = sphi 0, %s97
      %s99 = sphi 0, %s97
      %s100 = sphi 0, %s99
      %s114 = sphi 0, %s100
      %s118 = sphi 0, %s118
      %s120 = sphi 0, %s118
      %s121 = sphi 0, %s120
      %s135 = sphi 0, %s121
      %s143 = sphi 0, %s145
      %s146 = sphi 0, %s143
      %s147 = sphi 0, %s146
      %s163 = sphi 0, %s147
    $region4: #{tpu_custom_call.1} parent=1 // loop_header_branch
      %22 = sbr.rel (%p20) target = $region8
    $region5: #{tpu_custom_call.1} parent=1 // loop_body
      %s24 = ssub.s32 %s19, 1
      %s25 = ssub.s32 %s19, 2
      %s32 = sadd.s32 1, %s27
      %p33 = scmp.ge.s32.totalorder %s32, 1
      %s34 = scalar_select %p33, 0, %s32
      %s35 = sadd.s32 1, %s26
      %s36 = scalar_select %p33, %s35, %s26
      %p37 = scmp.ge.s32.totalorder %s36, 2
      %s38 = scalar_select %p37, 0, %s36
      %s39 = ssub.s32 %s26, %s38
      %s40 = ssub.s32 %s27, %s34
      %s41 = sor.u32 %s39, %s40
      %p42 = scmp.eq.s32.totalorder %s41, 0
      %s44 = sadd.s32 %s43, 1
      %s45 = scalar_select %p42, %s43, %s44
      %p48 = pneg %p42
      %p49 = scmp.eq.s32.totalorder %s19, 1
      %p50 = por %p48, %p49
      %p51 = scmp.ne.s32.totalorder %s43, %s46
      %p52 = scmp.eq.s32.totalorder %s19, 0
      %p53 = por %p51, %p52
      %p54 = scmp.ne.s32.totalorder %s43, %s46
      %p55 = scmp.eq.s32.totalorder %s24, 1
      %p56 = por %p54, %p55
      %p57 = scmp.ne.s32.totalorder %s46, %s47
      %p58 = scmp.eq.s32.totalorder %s24, 0
      %p59 = por %p57, %p58
      %p60 = scmp.ne.s32.totalorder %s46, %s47
      %p61 = scmp.eq.s32.totalorder %s25, 1
      %p62 = por %p60, %p61
      %p64 = scmp.ne.s32.totalorder %s47, %s63
      %p65 = scmp.eq.s32.totalorder %s25, 0
      %p66 = por %p64, %p65
      %s67 = sadd.s32 %s27, 1
      %s68 = sadd.s32 %s34, 1
      %s69 = ssub.s32 %s26, %s38
      %s70 = ssub.s32 %s67, %s68
      %s71 = sor.u32 %s69, %s70
      %p72 = scmp.eq.s32.totalorder %s71, 0
      %s74 = sadd.s32 %s73, 1
      %s75 = scalar_select %p72, %s73, %s74
      %p78 = pneg %p72
      %p79 = scmp.eq.s32.totalorder %s19, 1
      %p80 = por %p78, %p79
      %p81 = scmp.ne.s32.totalorder %s73, %s76
      %p82 = scmp.eq.s32.totalorder %s19, 0
      %p83 = por %p81, %p82
      %p84 = scmp.ne.s32.totalorder %s73, %s76
      %p85 = scmp.eq.s32.totalorder %s24, 1
      %p86 = por %p84, %p85
      %p87 = scmp.ne.s32.totalorder %s76, %s77
      %p88 = scmp.eq.s32.totalorder %s24, 0
      %p89 = por %p87, %p88
      %p90 = scmp.ne.s32.totalorder %s76, %s77
      %p91 = scmp.eq.s32.totalorder %s25, 1
      %p92 = por %p90, %p91
      %p94 = scmp.ne.s32.totalorder %s77, %s93
      %p95 = scmp.eq.s32.totalorder %s25, 0
      %p96 = por %p94, %p95
      %s98 = sadd.s32 %s97, 1
      %p101 = scmp.eq.s32.totalorder %s19, 1
      %p102 = scmp.ne.s32.totalorder %s97, %s99
      %p103 = scmp.eq.s32.totalorder %s19, 0
      %p104 = por %p102, %p103
      %p105 = scmp.ne.s32.totalorder %s97, %s99
      %p106 = scmp.eq.s32.totalorder %s24, 1
      %p107 = por %p105, %p106
      %p108 = scmp.ne.s32.totalorder %s99, %s100
      %p109 = scmp.eq.s32.totalorder %s24, 0
      %p110 = por %p108, %p109
      %p111 = scmp.ne.s32.totalorder %s99, %s100
      %p112 = scmp.eq.s32.totalorder %s25, 1
      %p113 = por %p111, %p112
      %p115 = scmp.ne.s32.totalorder %s100, %s114
      %p116 = scmp.eq.s32.totalorder %s25, 0
      %p117 = por %p115, %p116
      %s119 = sadd.s32 %s118, 1
      %p122 = scmp.eq.s32.totalorder %s19, 1
      %p123 = scmp.ne.s32.totalorder %s118, %s120
      %p124 = scmp.eq.s32.totalorder %s19, 0
      %p125 = por %p123, %p124
      %p126 = scmp.ne.s32.totalorder %s118, %s120
      %p127 = scmp.eq.s32.totalorder %s24, 1
      %p128 = por %p126, %p127
      %p129 = scmp.ne.s32.totalorder %s120, %s121
      %p130 = scmp.eq.s32.totalorder %s24, 0
      %p131 = por %p129, %p130
      %p132 = scmp.ne.s32.totalorder %s120, %s121
      %p133 = scmp.eq.s32.totalorder %s25, 1
      %p134 = por %p132, %p133
      %p136 = scmp.ne.s32.totalorder %s121, %s135
      %p137 = scmp.eq.s32.totalorder %s25, 0
      %p138 = por %p136, %p137
      %s139 = ssub.s32 %s26, %s38
      %s140 = ssub.s32 %s27, %s34
      %s141 = sor.u32 %s139, %s140
      %p142 = scmp.eq.s32.totalorder %s141, 0
      %s144 = sadd.s32 %s143, 1
      %s145 = scalar_select %p142, %s143, %s144
      %p148 = pneg %p142
      %p149 = scmp.eq.s32.totalorder %s19, 1
      %p150 = por %p148, %p149
      %p151 = scmp.ne.s32.totalorder %s143, %s146
      %p152 = scmp.eq.s32.totalorder %s19, 0
      %p153 = por %p151, %p152
      %p154 = scmp.ne.s32.totalorder %s143, %s146
      %p155 = scmp.eq.s32.totalorder %s24, 1
      %p156 = por %p154, %p155
      %p157 = scmp.ne.s32.totalorder %s146, %s147
      %p158 = scmp.eq.s32.totalorder %s24, 0
      %p159 = por %p157, %p158
      %p160 = scmp.ne.s32.totalorder %s146, %s147
      %p161 = scmp.eq.s32.totalorder %s25, 1
      %p162 = por %p160, %p161
      %p164 = scmp.ne.s32.totalorder %s147, %s163
      %p165 = scmp.eq.s32.totalorder %s25, 0
      %p166 = por %p164, %p165
      %p167 = scmp.le.s32.totalorder 1, %s19
      %p168 = scmp.lt.s32.totalorder %s19, 3
      %p169 = pnand %p167, %p168
      %p170 = pneg %p169
      // Predicated region
      $region9: #{tpu_custom_call.1} parent=5 // pred_check
        _
      $region10: #{tpu_custom_call.1} parent=5 // pred_check_branch
        %172 = sbr.rel (%p169) target = $region12
      $region11: #{tpu_custom_call.1} parent=5 // pred_region
        %s173 = ssub.s32 %s19, 1
        // Predicated region
        $region13: #{tpu_custom_call.1} parent=11 // pred_check
          %p174 = pneg %p110
        $region14: #{tpu_custom_call.1} parent=11 // pred_check_branch
          %176 = sbr.rel (%p174) target = $region16
        $region15: #{tpu_custom_call.1} parent=11 // pred_region
          _
        $region16: #{tpu_custom_call.1} parent=11 // pred_fallthru
          _
        // Predicated region
        $region17: #{tpu_custom_call.1} parent=11 // pred_check
          %p177 = pneg %p131
        $region18: #{tpu_custom_call.1} parent=11 // pred_check_branch
          %179 = sbr.rel (%p177) target = $region20
        $region19: #{tpu_custom_call.1} parent=11 // pred_region
          _
        $region20: #{tpu_custom_call.1} parent=11 // pred_fallthru
          _
      $region12: #{tpu_custom_call.1} parent=5 // pred_fallthru
        _
      %p180 = scmp.lt.s32.totalorder %s19, 2
      // Predicated region
      $region21: #{tpu_custom_call.1} parent=5 // pred_check
        %p181 = pneg %p180
      $region22: #{tpu_custom_call.1} parent=5 // pred_check_branch
        %183 = sbr.rel (%p181) target = $region24
      $region23: #{tpu_custom_call.1} parent=5 // pred_region
        // Predicated region
        $region25: #{tpu_custom_call.1} parent=23 // pred_check
          %p184 = pneg %p53
        $region26: #{tpu_custom_call.1} parent=23 // pred_check_branch
          %186 = sbr.rel (%p184) target = $region28
        $region27: #{tpu_custom_call.1} parent=23 // pred_region
          %s187 = sand.u32 %s43, 1
          %s188 = scalar_lea.sflag [#allocation4], %s187
          %s189 = sand.u32 %s43, 1
          %s190 = smul.addr %s189, 4
          %s191 = scalar_lea.vmem [#allocation3], %s190
          %s193 = ssub.s32 64, 64
          %194 = vsyncadd %s188, %s193
          %s195 = smul.addr %s26, 2
          %s196 = sadd.s32 %s27, %s195
          %s197 = smul.addr %s196, 64
          %s198 = scalar_lea.hbm %s0, %s197
          %s200 = sshll.u32 %s191, 4
          %s201 = int_to_ptr.vmem [resolvable:$true] %s200
          %203 = dma.hbm_to_vmem [thread:$0]  %s198, 64, %s201, %s188
        $region28: #{tpu_custom_call.1} parent=23 // pred_fallthru
          _
        // Predicated region
        $region29: #{tpu_custom_call.1} parent=23 // pred_check
          %p204 = pneg %p83
        $region30: #{tpu_custom_call.1} parent=23 // pred_check_branch
          %206 = sbr.rel (%p204) target = $region32
        $region31: #{tpu_custom_call.1} parent=23 // pred_region
          %s207 = sand.u32 %s73, 1
          %s208 = scalar_lea.sflag [#allocation7], %s207
          %s209 = sand.u32 %s73, 1
          %s210 = smul.addr %s209, 4
          %s211 = scalar_lea.vmem [#allocation6], %s210
          %s212 = sadd.s32 %s27, 1
          %s214 = ssub.s32 64, 64
          %215 = vsyncadd %s208, %s214
          %s216 = smul.addr %s26, 2
          %s217 = sadd.s32 %s212, %s216
          %s218 = smul.addr %s217, 64
          %s219 = scalar_lea.hbm %s1, %s218
          %s221 = sshll.u32 %s211, 4
          %s222 = int_to_ptr.vmem [resolvable:$true] %s221
          %224 = dma.hbm_to_vmem [thread:$0]  %s219, 64, %s222, %s208
        $region32: #{tpu_custom_call.1} parent=23 // pred_fallthru
          _
      $region24: #{tpu_custom_call.1} parent=5 // pred_fallthru
        _
      %p225 = scmp.le.s32.totalorder 1, %s19
      %p226 = scmp.lt.s32.totalorder %s19, 3
      %p227 = pnand %p225, %p226
      %p228 = pneg %p227
      // Predicated region
      $region33: #{tpu_custom_call.1} parent=5 // pred_check
        _
      $region34: #{tpu_custom_call.1} parent=5 // pred_check_branch
        %230 = sbr.rel (%p227) target = $region36
      $region35: #{tpu_custom_call.1} parent=5 // pred_region
        %s231 = ssub.s32 %s19, 1
        %s232 = sand.u32 %s46, 1
        %s233 = scalar_lea.sflag [#allocation4], %s232
        %s234 = sand.u32 %s46, 1
        %s235 = smul.addr %s234, 4
        %s236 = scalar_lea.vmem [#allocation3], %s235
        // Predicated region
        $region37: #{tpu_custom_call.1} parent=35 // pred_check
          %p237 = pneg %p59
        $region38: #{tpu_custom_call.1} parent=35 // pred_check_branch
          %239 = sbr.rel (%p237) target = $region40
        $region39: #{tpu_custom_call.1} parent=35 // pred_region
          %240 = dma.done %s233, 64
        $region40: #{tpu_custom_call.1} parent=35 // pred_fallthru
          _
        %s241 = sand.u32 %s76, 1
        %s242 = scalar_lea.sflag [#allocation7], %s241
        %s243 = sand.u32 %s76, 1
        %s244 = smul.addr %s243, 4
        %s245 = scalar_lea.vmem [#allocation6], %s244
        // Predicated region
        $region41: #{tpu_custom_call.1} parent=35 // pred_check
          %p246 = pneg %p89
        $region42: #{tpu_custom_call.1} parent=35 // pred_check_branch
          %248 = sbr.rel (%p246) target = $region44
        $region43: #{tpu_custom_call.1} parent=35 // pred_region
          %249 = dma.done %s242, 64
        $region44: #{tpu_custom_call.1} parent=35 // pred_fallthru
          _
        %s250 = sand.u32 %s46, 1
        %s251 = scalar_lea.sflag [#allocation4], %s250
        %s252 = sand.u32 %s46, 1
        %s253 = smul.addr %s252, 4
        %s254 = scalar_lea.vmem [#allocation3], %s253
        %p255 = pneg %p59
        %p256 = pneg %p56
        %s257 = sand.u32 %s76, 1
        %s258 = scalar_lea.sflag [#allocation7], %s257
        %s259 = sand.u32 %s76, 1
        %s260 = smul.addr %s259, 4
        %s261 = scalar_lea.vmem [#allocation6], %s260
        %p262 = pneg %p89
        %p263 = pneg %p86
        %p264 = pneg %p110
        %p265 = pneg %p107
        %p266 = pneg %p131
        %p267 = pneg %p128
        %p268 = pneg %p159
        %p269 = pneg %p156
        %s270 = sand.u32 %s146, 1
        %s271 = scalar_lea.sflag [#allocation5], %s270
        %s272 = sand.u32 %s146, 1
        %s273 = smul.addr %s272, 4
        %s274 = scalar_lea.vmem [#allocation8], %s273
        %s275 = sadd.s32 %s29, 1
        %v276 = vld [vmem:[%s236] sm:$0xf]
        %277 = vst [vmem:[#allocation2] sm:$0xf] %v276
        %v278 = vld [vmem:[%s245] sm:$0xf]
        %279 = vst [vmem:[#allocation2 + $0x4] sm:$0xf] %v278
        %v280 = vld [vmem:[%s2] sm:$0xf]
        %v281 = vld [vmem:[%s3] sm:$0xf]
        %283 = vset.pattern.permute.xlu0 0
        %284 = vperm.xlu0 %283, %v281
        %v285 = vpop.permute.xlu0 %284
        %v287 = vld [vmem:[#allocation2] sm:$0xf]
        %289 = vset.pattern.permute.xlu0 0
        %290 = vperm.xlu0 %289, %v280
        %v291 = vpop.permute.xlu0 %290
        %v293 = vmul.f32 %v287, %v291
        %v294 = vadd.f32 %v285, %v293
        %v295 = vld [vmem:[#allocation2] sm:$0xff]
        %296 = vset.pattern.permute.xlu0 1
        %297 = vperm.xlu0 %296, %v280
        %v298 = vpop.permute.xlu0 %297
        %v300 = vmul.f32 %v295, %v298
        %v302 = vcombine.high %v300, %v300
        %303 = vrot.lane.b32.xlu0 %v300, 127
        %v304 = vpop.permute.xlu0 %303
        %305 = vrot.lane.b32.xlu0 %v302, 127
        %v306 = vpop.permute.xlu0 %305
        %vm307 = vcmask 1039360
        %v308 = vsel %vm307, %v304, %v306
        %v310 = vadd.f32 %v294, %v308
        %v311 = vld [vmem:[#allocation2] sm:$0xff]
        %312 = vset.pattern.permute.xlu0 2
        %313 = vperm.xlu0 %312, %v280
        %v314 = vpop.permute.xlu0 %313
        %v316 = vmul.f32 %v311, %v314
        %v318 = vcombine.high %v316, %v316
        %319 = vrot.lane.b32.xlu0 %v316, 126
        %v320 = vpop.permute.xlu0 %319
        %321 = vrot.lane.b32.xlu0 %v318, 126
        %v322 = vpop.permute.xlu0 %321
        %vm323 = vcmask 1031168
        %v324 = vsel %vm323, %v320, %v322
        %v326 = vadd.f32 %v310, %v324
        %327 = vst [vmem:[%s274] sm:$0xf] %v326
        %s328 = sand.u32 %s146, 1
        %s329 = scalar_lea.sflag [#allocation5], %s328
        %s330 = sand.u32 %s146, 1
        %s331 = smul.addr %s330, 4
        %s332 = scalar_lea.vmem [#allocation8], %s331
        // Predicated region
        $region45: #{tpu_custom_call.1} parent=35 // pred_check
          %p333 = pneg %p156
        $region46: #{tpu_custom_call.1} parent=35 // pred_check_branch
          %335 = sbr.rel (%p333) target = $region48
        $region47: #{tpu_custom_call.1} parent=35 // pred_region
          %s337 = ssub.s32 64, 64
          %338 = vsyncadd %s329, %s337
          %s339 = sadd.s32 %s29, %s28
          %s340 = smul.addr %s339, 64
          %s341 = scalar_lea.hbm %s4, %s340
          %s343 = sshll.u32 %s332, 4
          %s344 = int_to_ptr.vmem [resolvable:$true] %s343
          %346 = dma.vmem_to_hbm [thread:$0]  %s344, 64, %s341, %s329
        $region48: #{tpu_custom_call.1} parent=35 // pred_fallthru
          _
      $region36: #{tpu_custom_call.1} parent=5 // pred_fallthru
        _
      %p347 = scmp.le.s32.totalorder 2, %s19
      // Predicated region
      $region49: #{tpu_custom_call.1} parent=5 // pred_check
        %p348 = pneg %p347
      $region50: #{tpu_custom_call.1} parent=5 // pred_check_branch
        %350 = sbr.rel (%p348) target = $region52
      $region51: #{tpu_custom_call.1} parent=5 // pred_region
        %s351 = ssub.s32 %s19, 2
        // Predicated region
        $region53: #{tpu_custom_call.1} parent=51 // pred_check
          %p352 = pneg %p162
        $region54: #{tpu_custom_call.1} parent=51 // pred_check_branch
          %354 = sbr.rel (%p352) target = $region56
        $region55: #{tpu_custom_call.1} parent=51 // pred_region
          %s355 = sand.u32 %s147, 1
          %s356 = scalar_lea.sflag [#allocation5], %s355
          %s357 = sand.u32 %s147, 1
          %s358 = smul.addr %s357, 4
          %s359 = scalar_lea.vmem [#allocation8], %s358
          %360 = dma.done %s356, 64
        $region56: #{tpu_custom_call.1} parent=51 // pred_fallthru
          _
      $region52: #{tpu_custom_call.1} parent=5 // pred_fallthru
        _
    $region6: #{tpu_custom_call.1} parent=1 // loop_footer
      %s23 = sadd.s32 1, %s19
    $region7: #{tpu_custom_call.1} parent=1 // loop_footer_branch
      %18 = sbr.rel target = $region3
    $region8: #{tpu_custom_call.1} parent=1 // loop_exit
      _
    %361 = vsyncpa [#allocation4], 1
    %s362 = scalar_lea.sflag [#allocation4], 1
    %363 = vsyncpa %s362, 1
    %364 = vsyncpa [#allocation7], 1
    %s365 = scalar_lea.sflag [#allocation7], 1
    %366 = vsyncpa %s365, 1
    %367 = vsyncpa [#allocation5], 1
    %s368 = scalar_lea.sflag [#allocation5], 1
    %369 = vsyncpa %s368, 1

</llo_original>
